<compile_context>
chip_gen: v6e
topology: v6e:2x2x1
jax: 0.10.0
libtpu: 0.0.40
codegen_flags: <defaults>
</compile_context>

<pallas_src>
import jax
import jax.numpy as jnp
from jax.experimental import pallas as pl
from jax.experimental.pallas import tpu as pltpu


# ---------------------------------------------------------------------------
# model dimensions (small "external small model" export)
# ---------------------------------------------------------------------------
N = 256          # number of planner states evaluated per call (demo batch)
TB = 128         # batch tile per grid step (128 works everywhere; 256 is
                 # slightly better on v6e/v7x's 256-wide MXU)
DX = 4           # planner state input (current + goal 2-D position)
DOBS = 28        # obstacle / environment encoding
DIN = DX + DOBS  # 32
H = 64           # per-net hidden width
HF = 2 * H       # 128 = fused hidden width (one full lane width)
DOUT = 2         # each net emits (x, y)
OUT = 4          # interleaved wrapper output width

# packed parameter slab row offsets (all segment starts 8-aligned)
R_W1 = 0              # rows [0, 32)    : fused W1        (32, 128)
R_W2 = R_W1 + DIN     # rows [32, 160)  : block-diag W2   (128, 128)
R_W3 = R_W2 + HF      # rows [160, 288) : interleaved W3  (128, 128), cols 0:4 used
R_B = R_W3 + HF       # rows [288, 296) : row 0=b1, 1=b2, 2=b3 (cols 0:4), rest 0
ROWS = R_B + 8        # 296


# ---------------------------------------------------------------------------
# kernel: one (TB, 32) batch tile through the fused 128-wide MLP
# ---------------------------------------------------------------------------
def posvel_kernel(inp_ref, w_ref, out_ref):
    inp = inp_ref[...]                 # (TB, 32)  = concat(x, obs)

    w1 = w_ref[R_W1:R_W1 + DIN, :]     # (32, 128)  aligned load
    w2 = w_ref[R_W2:R_W2 + HF, :]      # (128, 128)
    w3 = w_ref[R_W3:R_W3 + HF, :]      # (128, 128) (cols 0:4 meaningful)
    bt = w_ref[R_B:R_B + 8, :]         # (8, 128) bias tile

    b1 = bt[0:1, :]
    b2 = bt[1:2, :]
    b3 = bt[2:3, :]

    # layer 1: single K=32 dot (x/obs already fused on the wrapper side)
    h1 = jnp.maximum(
        jnp.dot(inp, w1, preferred_element_type=jnp.float32) + b1, 0.0)
    # layer 2: block-diagonal keeps PNet / VNet halves independent
    h2 = jnp.maximum(
        jnp.dot(h1, w2, preferred_element_type=jnp.float32) + b2, 0.0)
    # layer 3: output columns already ordered [pos0, vel0, pos1, vel1, 0...]
    o = jnp.dot(h2, w3, preferred_element_type=jnp.float32) + b3   # (TB, 128)

    # lane-dense store of the full 128-wide result; wrapper slices [:, :4]
    out_ref[...] = o.astype(out_ref.dtype)


def posvel_kmpnet(x, obs, wslab, *, tb=TB):
    """Forward pass. x: (N, DX), obs: (N, DOBS), wslab: (ROWS, 128) -> (N, 4)."""
    n = x.shape[0]
    # single fused lane-dense input (one DMA per tile, one K=32 dot in-kernel)
    inp = jnp.concatenate(
        [x.astype(jnp.float32), obs.astype(jnp.float32)], axis=1)    # (n, 32)

    n_pad = pl.cdiv(n, tb) * tb
    if n_pad != n:
        inp = jnp.pad(inp, ((0, n_pad - n), (0, 0)))

    out = pl.pallas_call(
        posvel_kernel,
        out_shape=jax.ShapeDtypeStruct((n_pad, HF), jnp.float32),
        grid=(n_pad // tb,),
        in_specs=[
            # batch tile marches along the grid
            pl.BlockSpec((tb, DIN), lambda i: (i, 0)),
            # weight slab: constant block index -> DMA'd once, VMEM-resident
            pl.BlockSpec((ROWS, HF), lambda i: (0, 0)),
        ],
        out_specs=pl.BlockSpec((tb, HF), lambda i: (i, 0)),
        compiler_params=pltpu.CompilerParams(
            dimension_semantics=("parallel",)),   # both v7x TCs share the batch
    )(inp, wslab)

    return out[:n, :OUT]   # free XLA slice of the lane-dense result


# ---------------------------------------------------------------------------
# parameter construction + one-time packing (glue, not in the kernel)
# ---------------------------------------------------------------------------
def make_params(key):
    """Deterministic synthetic parameters for PNet and VNet."""
    def linear(k, fan_in, fan_out):
        kw, kb = jax.random.split(k)
        scale = 1.0 / jnp.sqrt(jnp.float32(fan_in))
        w = jax.random.uniform(kw, (fan_in, fan_out), jnp.float32,
                               minval=-scale, maxval=scale)
        b = jax.random.uniform(kb, (1, fan_out), jnp.float32,
                               minval=-scale, maxval=scale)
        return w, b

    keys = jax.random.split(key, 6)
    w1p, b1p = linear(keys[0], DIN, H)
    w2p, b2p = linear(keys[1], H, H)
    w3p, b3p = linear(keys[2], H, DOUT)
    w1v, b1v = linear(keys[3], DIN, H)
    w2v, b2v = linear(keys[4], H, H)
    w3v, b3v = linear(keys[5], H, DOUT)
    return (w1p, b1p, w2p, b2p, w3p, b3p,
            w1v, b1v, w2v, b2v, w3v, b3v)


def pack_params(params):
    """Pack both nets into a single (ROWS, 128) f32 slab (done once)."""
    (w1p, b1p, w2p, b2p, w3p, b3p,
     w1v, b1v, w2v, b2v, w3v, b3v) = params
    slab = jnp.zeros((ROWS, HF), jnp.float32)

    # layer 1: columns 0:H -> PNet hidden, H:2H -> VNet hidden
    slab = slab.at[R_W1:R_W1 + DIN, :].set(
        jnp.concatenate([w1p, w1v], axis=1))

    # layer 2: block diagonal
    slab = slab.at[R_W2:R_W2 + H, 0:H].set(w2p)
    slab = slab.at[R_W2 + H:R_W2 + 2 * H, H:2 * H].set(w2v)

    # layer 3: columns pre-interleaved as [pos0, vel0, pos1, vel1]
    slab = slab.at[R_W3:R_W3 + H, 0].set(w3p[:, 0])
    slab = slab.at[R_W3 + H:R_W3 + 2 * H, 1].set(w3v[:, 0])
    slab = slab.at[R_W3:R_W3 + H, 2].set(w3p[:, 1])
    slab = slab.at[R_W3 + H:R_W3 + 2 * H, 3].set(w3v[:, 1])

    # biases (one aligned 8-row tile); b3 cols 4:127 stay zero -> zero lanes out
    slab = slab.at[R_B + 0, :].set(jnp.concatenate([b1p[0], b1v[0]]))
    slab = slab.at[R_B + 1, :].set(jnp.concatenate([b2p[0], b2v[0]]))
    slab = slab.at[R_B + 2, 0:OUT].set(
        jnp.stack([b3p[0, 0], b3v[0, 0], b3p[0, 1], b3v[0, 1]]))
    return slab


# ---------------------------------------------------------------------------
# pure-JAX reference (mirrors the PyTorch forward exactly, unfused)
# ---------------------------------------------------------------------------
def reference(x, obs, params):
    (w1p, b1p, w2p, b2p, w3p, b3p,
     w1v, b1v, w2v, b2v, w3v, b3v) = params
    inp = jnp.concatenate([x, obs], axis=1).astype(jnp.float32)

    def mlp(i, w1, b1, w2, b2, w3, b3):
        h1 = jnp.maximum(i @ w1 + b1, 0.0)
        h2 = jnp.maximum(h1 @ w2 + b2, 0.0)
        return h2 @ w3 + b3

    pos = mlp(inp, w1p, b1p, w2p, b2p, w3p, b3p)
    vel = mlp(inp, w1v, b1v, w2v, b2v, w3v, b3v)
    return jnp.stack([pos[:, 0], vel[:, 0], pos[:, 1], vel[:, 1]], axis=1)


if __name__ == "__main__":
    key = jax.random.PRNGKey(0)
    kp, kx, ko = jax.random.split(key, 3)

    params = make_params(kp)
    wslab = pack_params(params)          # packed once, outside the kernel
    x = jax.random.normal(kx, (N, DX), jnp.float32)
    obs = jax.random.normal(ko, (N, DOBS), jnp.float32)

    fwd = jax.jit(posvel_kmpnet)
    out = jax.block_until_ready(fwd(x, obs, wslab))

    ref = reference(x, obs, params)
    assert out.shape == (N, OUT)
    assert jnp.allclose(out, ref, atol=1e-5, rtol=1e-5), "mismatch vs reference"

    print("KERNEL_OK")
</pallas_src>

<mosaic_0001>
module attributes {stable_mosaic.version = 11 : i64} {
  func.func @posvel_kernel(%arg0: i32, %arg1: memref<128x32xf32, #tpu.memory_space<vmem>>, %arg2: memref<296x128xf32, #tpu.memory_space<vmem>>, %arg3: memref<128x128xf32, #tpu.memory_space<vmem>>) attributes {dimension_semantics = [#tpu.dimension_semantics<parallel>], iteration_bounds = array<i64: 2>, scalar_prefetch = 0 : i64, scratch_operands = 0 : i64, tpu.core_type = #tpu.core_type<tc>, window_params = [{transform_indices = @transform_0, window_bounds = array<i64: 128, 32>}, {pipeline_mode = #tpu.pipeline_mode<synchronous>, transform_indices = @transform_1, window_bounds = array<i64: 296, 128>}, {transform_indices = @transform_2, window_bounds = array<i64: 128, 128>}]} {
    %c0 = arith.constant 0 : index
    %c0_0 = arith.constant 0 : index
    %0 = vector.load %arg1[%c0, %c0_0] : memref<128x32xf32, #tpu.memory_space<vmem>>, vector<128x32xf32>
    %c0_1 = arith.constant 0 : index
    %c0_2 = arith.constant 0 : index
    %1 = vector.load %arg2[%c0_1, %c0_2] : memref<296x128xf32, #tpu.memory_space<vmem>>, vector<32x128xf32>
    %c32 = arith.constant 32 : index
    %c0_3 = arith.constant 0 : index
    %2 = vector.load %arg2[%c32, %c0_3] : memref<296x128xf32, #tpu.memory_space<vmem>>, vector<128x128xf32>
    %c160 = arith.constant 160 : index
    %c0_4 = arith.constant 0 : index
    %3 = vector.load %arg2[%c160, %c0_4] : memref<296x128xf32, #tpu.memory_space<vmem>>, vector<128x128xf32>
    %c288 = arith.constant 288 : index
    %c0_5 = arith.constant 0 : index
    %4 = vector.load %arg2[%c288, %c0_5] : memref<296x128xf32, #tpu.memory_space<vmem>>, vector<8x128xf32>
    %5 = vector.extract_strided_slice %4 {offsets = [0, 0], sizes = [1, 128], strides = [1, 1]} : vector<8x128xf32> to vector<1x128xf32>
    %6 = vector.extract_strided_slice %4 {offsets = [1, 0], sizes = [1, 128], strides = [1, 1]} : vector<8x128xf32> to vector<1x128xf32>
    %7 = vector.extract_strided_slice %4 {offsets = [2, 0], sizes = [1, 128], strides = [1, 1]} : vector<8x128xf32> to vector<1x128xf32>
    %cst = arith.constant dense<0.000000e+00> : vector<128x128xf32>
    %8 = tpu.matmul %0, %1, %cst {dimension_numbers = #tpu.dot_dimension_numbers<[1], [0], [0], [1], [0, 0, 1, 1], [], []>} : vector<128x32xf32>, vector<32x128xf32>, vector<128x128xf32> -> vector<128x128xf32>
    %9 = vector.broadcast %5 : vector<1x128xf32> to vector<128x128xf32>
    %10 = arith.addf %8, %9 : vector<128x128xf32>
    %cst_6 = arith.constant 0.000000e+00 : f32
    %11 = vector.broadcast %cst_6 : f32 to vector<128x128xf32>
    %12 = arith.maximumf %10, %11 : vector<128x128xf32>
    %cst_7 = arith.constant dense<0.000000e+00> : vector<128x128xf32>
    %13 = tpu.matmul %12, %2, %cst_7 {dimension_numbers = #tpu.dot_dimension_numbers<[1], [0], [0], [1], [0, 0, 1, 1], [], []>} : vector<128x128xf32>, vector<128x128xf32>, vector<128x128xf32> -> vector<128x128xf32>
    %14 = vector.broadcast %6 : vector<1x128xf32> to vector<128x128xf32>
    %15 = arith.addf %13, %14 : vector<128x128xf32>
    %cst_8 = arith.constant 0.000000e+00 : f32
    %16 = vector.broadcast %cst_8 : f32 to vector<128x128xf32>
    %17 = arith.maximumf %15, %16 : vector<128x128xf32>
    %cst_9 = arith.constant dense<0.000000e+00> : vector<128x128xf32>
    %18 = tpu.matmul %17, %3, %cst_9 {dimension_numbers = #tpu.dot_dimension_numbers<[1], [0], [0], [1], [0, 0, 1, 1], [], []>} : vector<128x128xf32>, vector<128x128xf32>, vector<128x128xf32> -> vector<128x128xf32>
    %19 = vector.broadcast %7 : vector<1x128xf32> to vector<128x128xf32>
    %20 = arith.addf %18, %19 : vector<128x128xf32>
    %c0_10 = arith.constant 0 : index
    %c0_11 = arith.constant 0 : index
    %21 = vector.load %arg3[%c0_10, %c0_11] : memref<128x128xf32, #tpu.memory_space<vmem>>, vector<128x128xf32>
    tpu.vector_store %arg3[%c0_10, %c0_11], %20 {strides = array<i32>} : memref<128x128xf32, #tpu.memory_space<vmem>>, vector<128x128xf32>,
    return
  }
  func.func @transform_0(%arg0: i32) -> (i32, i32) {
    %c0_i32 = arith.constant 0 : i32
    %c0_i32_0 = arith.constant 0 : i32
    return %arg0, %c0_i32 : i32, i32
  }
  func.func @transform_1(%arg0: i32) -> (i32, i32) {
    %c0_i32 = arith.constant 0 : i32
    %c0_i32_0 = arith.constant 0 : i32
    %c0_i32_1 = arith.constant 0 : i32
    return %c0_i32, %c0_i32_0 : i32, i32
  }
  func.func @transform_2(%arg0: i32) -> (i32, i32) {
    %c0_i32 = arith.constant 0 : i32
    %c0_i32_0 = arith.constant 0 : i32
    return %arg0, %c0_i32 : i32, i32
  }
}

</mosaic_0001>

<llo_original>
// kernel: posvel_kmpnet.1
$region0: #{posvel_kmpnet.1}
  #allocation0 [shape = 'u32[]', space=smem, size = 0x4, offset = 0x4, fixed_abs, tag = 'smem constant byte address 0x4 - core index']
  #allocation1 [shape = 'u32[144,128]{1,0:T(1,128)}', space=vmem, size = 0x12000, scoped, tag = 'internal scratch']
  %s0 = inlined_call_operand.vmem [shape: f32[256,32], index: 0, kind: input, shape index: {}]
  %s1 = inlined_call_operand.vmem [shape: f32[296,128], index: 1, kind: input, shape index: {}]
  %s2 = inlined_call_operand.vmem [shape: f32[256,128], index: 2, kind: output, shape index: {}]
  %s3 = sld [smem:[#allocation0]]
  $region41: #{posvel_kmpnet.1} parent=0
    _
  %s5 = ssub.s32 1, %s3
  %s6 = scalar_select 0, %s5, %s3
  loop: start=0, step=1, limit=4
  $region2: #{posvel_kmpnet.1} parent=0 // loop_pre_header
    _
  $region3: #{posvel_kmpnet.1} parent=0 // loop_header
    %s8 = sphi 0, %s12
    %p9 = scmp.ge.s32.totalorder %s8, 4
    %s18 = sphi 0, %s20
    %s21 = sphi 0, %s18
    %s22 = sphi 0, %s21
    %s38 = sphi 0, %s22
    %s42 = sphi 0, %s42
    %s44 = sphi 0, %s42
    %s45 = sphi 0, %s44
    %s59 = sphi 0, %s45
    %s65 = sphi 0, %s67
    %s68 = sphi 0, %s65
    %s69 = sphi 0, %s68
    %s85 = sphi 0, %s69
  $region4: #{posvel_kmpnet.1} parent=0 // loop_header_branch
    %11 = sbr.rel (%p9) target = $region8
  $region5: #{posvel_kmpnet.1} parent=0 // loop_body
    %s13 = ssub.s32 %s8, 1
    %s14 = ssub.s32 %s8, 2
    %s15 = sadd.s32 %s8, 1
    %s16 = ssub.s32 %s8, %s15
    %p17 = scmp.eq.s32.totalorder %s16, 0
    %s19 = sadd.s32 %s18, 1
    %s20 = scalar_select %p17, %s18, %s19
    %p23 = pneg %p17
    %p24 = scmp.eq.s32.totalorder %s8, 1
    %p25 = por %p23, %p24
    %p26 = scmp.ne.s32.totalorder %s18, %s21
    %p27 = scmp.eq.s32.totalorder %s8, 0
    %p28 = por %p26, %p27
    %p29 = scmp.ne.s32.totalorder %s18, %s21
    %p30 = scmp.eq.s32.totalorder %s13, 1
    %p31 = por %p29, %p30
    %p32 = scmp.ne.s32.totalorder %s21, %s22
    %p33 = scmp.eq.s32.totalorder %s13, 0
    %p34 = por %p32, %p33
    %p35 = scmp.ne.s32.totalorder %s21, %s22
    %p36 = scmp.eq.s32.totalorder %s14, 1
    %p37 = por %p35, %p36
    %p39 = scmp.ne.s32.totalorder %s22, %s38
    %p40 = scmp.eq.s32.totalorder %s14, 0
    %p41 = por %p39, %p40
    %s43 = sadd.s32 %s42, 1
    %p46 = scmp.eq.s32.totalorder %s8, 1
    %p47 = scmp.ne.s32.totalorder %s42, %s44
    %p48 = scmp.eq.s32.totalorder %s8, 0
    %p49 = por %p47, %p48
    %p50 = scmp.ne.s32.totalorder %s42, %s44
    %p51 = scmp.eq.s32.totalorder %s13, 1
    %p52 = por %p50, %p51
    %p53 = scmp.ne.s32.totalorder %s44, %s45
    %p54 = scmp.eq.s32.totalorder %s13, 0
    %p55 = por %p53, %p54
    %p56 = scmp.ne.s32.totalorder %s44, %s45
    %p57 = scmp.eq.s32.totalorder %s14, 1
    %p58 = por %p56, %p57
    %p60 = scmp.ne.s32.totalorder %s45, %s59
    %p61 = scmp.eq.s32.totalorder %s14, 0
    %p62 = por %p60, %p61
    %s63 = ssub.s32 %s8, %s15
    %p64 = scmp.eq.s32.totalorder %s63, 0
    %s66 = sadd.s32 %s65, 1
    %s67 = scalar_select %p64, %s65, %s66
    %p70 = pneg %p64
    %p71 = scmp.eq.s32.totalorder %s8, 1
    %p72 = por %p70, %p71
    %p73 = scmp.ne.s32.totalorder %s65, %s68
    %p74 = scmp.eq.s32.totalorder %s8, 0
    %p75 = por %p73, %p74
    %p76 = scmp.ne.s32.totalorder %s65, %s68
    %p77 = scmp.eq.s32.totalorder %s13, 1
    %p78 = por %p76, %p77
    %p79 = scmp.ne.s32.totalorder %s68, %s69
    %p80 = scmp.eq.s32.totalorder %s13, 0
    %p81 = por %p79, %p80
    %p82 = scmp.ne.s32.totalorder %s68, %s69
    %p83 = scmp.eq.s32.totalorder %s14, 1
    %p84 = por %p82, %p83
    %p86 = scmp.ne.s32.totalorder %s69, %s85
    %p87 = scmp.eq.s32.totalorder %s14, 0
    %p88 = por %p86, %p87
    %p89 = scmp.le.s32.totalorder 1, %s8
    %p90 = scmp.lt.s32.totalorder %s8, 3
    %p91 = pnand %p89, %p90
    %p92 = pneg %p91
    // Predicated region
    $region9: #{posvel_kmpnet.1} parent=5 // pred_check
      _
    $region10: #{posvel_kmpnet.1} parent=5 // pred_check_branch
      %94 = sbr.rel (%p91) target = $region12
    $region11: #{posvel_kmpnet.1} parent=5 // pred_region
      %s95 = ssub.s32 %s8, 1
      // Predicated region
      $region13: #{posvel_kmpnet.1} parent=11 // pred_check
        %p96 = pneg %p55
      $region14: #{posvel_kmpnet.1} parent=11 // pred_check_branch
        %98 = sbr.rel (%p96) target = $region16
      $region15: #{posvel_kmpnet.1} parent=11 // pred_region
        _
      $region16: #{posvel_kmpnet.1} parent=11 // pred_fallthru
        _
    $region12: #{posvel_kmpnet.1} parent=5 // pred_fallthru
      _
    %p99 = scmp.lt.s32.totalorder %s8, 2
    // Predicated region
    $region17: #{posvel_kmpnet.1} parent=5 // pred_check
      %p100 = pneg %p99
    $region18: #{posvel_kmpnet.1} parent=5 // pred_check_branch
      %102 = sbr.rel (%p100) target = $region20
    $region19: #{posvel_kmpnet.1} parent=5 // pred_region
      // Predicated region
      $region21: #{posvel_kmpnet.1} parent=19 // pred_check
        %p103 = pneg %p28
      $region22: #{posvel_kmpnet.1} parent=19 // pred_check_branch
        %105 = sbr.rel (%p103) target = $region24
      $region23: #{posvel_kmpnet.1} parent=19 // pred_region
        %s106 = smul.u32 16, %s8
        %p107 = scmp.lt.s32.totalorder %s106, 31
        %s108 = scalar_select %p107, %s106, 31
        %s109 = smul.addr %s108, 8
        %s110 = scalar_lea.vmem %s0, %s109
        %s111 = smul.u32 16, %s8
      $region24: #{posvel_kmpnet.1} parent=19 // pred_fallthru
        _
    $region20: #{posvel_kmpnet.1} parent=5 // pred_fallthru
      _
    %p112 = scmp.le.s32.totalorder 1, %s8
    %p113 = scmp.lt.s32.totalorder %s8, 3
    %p114 = pnand %p112, %p113
    %p115 = pneg %p114
    // Predicated region
    $region25: #{posvel_kmpnet.1} parent=5 // pred_check
      _
    $region26: #{posvel_kmpnet.1} parent=5 // pred_check_branch
      %117 = sbr.rel (%p114) target = $region28
    $region27: #{posvel_kmpnet.1} parent=5 // pred_region
      %s118 = ssub.s32 %s8, 1
      %s119 = smul.u32 16, %s13
      %p120 = scmp.lt.s32.totalorder %s119, 31
      %s121 = scalar_select %p120, %s119, 31
      %s122 = smul.addr %s121, 8
      %s123 = scalar_lea.vmem %s0, %s122
      %p124 = pneg %p34
      %p125 = pneg %p31
      %p126 = pneg %p55
      %p127 = pneg %p52
      %p128 = pneg %p81
      %p129 = pneg %p78
      %s130 = smul.u32 16, %s13
      %p131 = scmp.lt.s32.totalorder %s130, 31
      %s132 = scalar_select %p131, %s130, 31
      %s133 = smul.addr %s132, 8
      %s134 = scalar_lea.vmem %s2, %s133
      %s135 = smul.u32 16, %s13
      %p136 = scmp.lt.s32.totalorder %s135, 31
      %s137 = scalar_select %p136, %s135, 31
      %s138 = smul.addr %s137, 8
      %s139 = scalar_lea.vmem %s0, %s138
      %s140 = smul.u32 16, %s13
      %s141 = smul.u32 16, %s13
      %p142 = scmp.lt.s32.totalorder %s141, 31
      %s143 = scalar_select %p142, %s141, 31
      %s144 = smul.addr %s143, 8
      %s145 = scalar_lea.vmem %s2, %s144
      %s146 = smul.u32 16, %s13
      %v147 = vld [vmem:[%s139] sm:$0xff]
      %v148 = vld [vmem:[%s139 + $0x8] sm:$0xff]
      %v149 = vld [vmem:[%s139 + $0x10] sm:$0xff]
      %v150 = vld [vmem:[%s139 + $0x18] sm:$0xff]
      %v151 = vld [vmem:[%s139 + $0x20] sm:$0xff]
      %v152 = vld [vmem:[%s139 + $0x28] sm:$0xff]
      %v153 = vld [vmem:[%s139 + $0x30] sm:$0xff]
      %v154 = vld [vmem:[%s139 + $0x38] sm:$0xff]
      %v155 = vld [vmem:[%s139 + $0x40] sm:$0xff]
      %v156 = vld [vmem:[%s139 + $0x48] sm:$0xff]
      %v157 = vld [vmem:[%s139 + $0x50] sm:$0xff]
      %v158 = vld [vmem:[%s139 + $0x58] sm:$0xff]
      %v159 = vld [vmem:[%s139 + $0x60] sm:$0xff]
      %v160 = vld [vmem:[%s139 + $0x68] sm:$0xff]
      %v161 = vld [vmem:[%s139 + $0x70] sm:$0xff]
      %v162 = vld [vmem:[%s139 + $0x78] sm:$0xff]
      %v163 = vld [vmem:[%s1] sm:$0xff]
      %v164 = vld [vmem:[%s1 + $0x8] sm:$0xff]
      %v165 = vld [vmem:[%s1 + $0x10] sm:$0xff]
      %v166 = vld [vmem:[%s1 + $0x18] sm:$0xff]
      %v167 = vld [vmem:[%s1 + $0x20] sm:$0xff]
      %v168 = vld [vmem:[%s1 + $0x28] sm:$0xff]
      %v169 = vld [vmem:[%s1 + $0x30] sm:$0xff]
      %v170 = vld [vmem:[%s1 + $0x38] sm:$0xff]
      %v171 = vld [vmem:[%s1 + $0x40] sm:$0xff]
      %v172 = vld [vmem:[%s1 + $0x48] sm:$0xff]
      %v173 = vld [vmem:[%s1 + $0x50] sm:$0xff]
      %v174 = vld [vmem:[%s1 + $0x58] sm:$0xff]
      %v175 = vld [vmem:[%s1 + $0x60] sm:$0xff]
      %v176 = vld [vmem:[%s1 + $0x68] sm:$0xff]
      %v177 = vld [vmem:[%s1 + $0x70] sm:$0xff]
      %v178 = vld [vmem:[%s1 + $0x78] sm:$0xff]
      %v179 = vld [vmem:[%s1 + $0x80] sm:$0xff]
      %v180 = vld [vmem:[%s1 + $0x88] sm:$0xff]
      %v181 = vld [vmem:[%s1 + $0x90] sm:$0xff]
      %v182 = vld [vmem:[%s1 + $0x98] sm:$0xff]
      %v183 = vld [vmem:[%s1 + $0xa0] sm:$0xff]
      %v184 = vld [vmem:[%s1 + $0xa8] sm:$0xff]
      %v185 = vld [vmem:[%s1 + $0xb0] sm:$0xff]
      %v186 = vld [vmem:[%s1 + $0xb8] sm:$0xff]
      %v187 = vld [vmem:[%s1 + $0xc0] sm:$0xff]
      %v188 = vld [vmem:[%s1 + $0xc8] sm:$0xff]
      %v189 = vld [vmem:[%s1 + $0xd0] sm:$0xff]
      %v190 = vld [vmem:[%s1 + $0xd8] sm:$0xff]
      %v191 = vld [vmem:[%s1 + $0xe0] sm:$0xff]
      %v192 = vld [vmem:[%s1 + $0xe8] sm:$0xff]
      %v193 = vld [vmem:[%s1 + $0xf0] sm:$0xff]
      %v194 = vld [vmem:[%s1 + $0xf8] sm:$0xff]
      %v195 = vld [vmem:[%s1 + $0x100] sm:$0xff]
      %v196 = vld [vmem:[%s1 + $0x108] sm:$0xff]
      %v197 = vld [vmem:[%s1 + $0x110] sm:$0xff]
      %v198 = vld [vmem:[%s1 + $0x118] sm:$0xff]
      %v199 = vld [vmem:[%s1 + $0x120] sm:$0xff]
      %v200 = vlaneseq
      %v201 = vshrl.u32 %v200, 7
      %v202 = vsub.s32 0, %v201
      %v203 = vrot.slane %v199, %v202
      %vm204 = vcmask 261120
      %v206 = vsel %vm204, %v147, 0
      %v209 = vsel %vm204, %v148, 0
      %v212 = vsel %vm204, %v149, 0
      %v215 = vsel %vm204, %v150, 0
      %v218 = vsel %vm204, %v151, 0
      %v221 = vsel %vm204, %v152, 0
      %v224 = vsel %vm204, %v153, 0
      %v227 = vsel %vm204, %v154, 0
      %v230 = vsel %vm204, %v155, 0
      %v233 = vsel %vm204, %v156, 0
      %v236 = vsel %vm204, %v157, 0
      %v239 = vsel %vm204, %v158, 0
      %v242 = vsel %vm204, %v159, 0
      %v245 = vsel %vm204, %v160, 0
      %v248 = vsel %vm204, %v161, 0
      %v251 = vsel %vm204, %v162, 0
      %253 = vmatprep.subr.mxu0 0.0
      %254 = vmatpush1.msra.mxu0 0.0
      %255 = vmatprep.subr.mxu0 0.0
      %256 = vmatpush1.msra.mxu0 0.0
      %257 = vmatprep.subr.mxu0 0.0
      %258 = vmatpush1.msra.mxu0 0.0
      %259 = vmatprep.subr.mxu0 0.0
      %260 = vmatpush1.msra.mxu0 0.0
      %261 = vmatprep.subr.mxu0 0.0
      %262 = vmatpush1.msra.mxu0 0.0
      %263 = vmatprep.subr.mxu0 0.0
      %264 = vmatpush1.msra.mxu0 0.0
      %265 = vmatprep.subr.mxu0 0.0
      %266 = vmatpush1.msra.mxu0 0.0
      %267 = vmatprep.subr.mxu0 0.0
      %268 = vmatpush1.msra.mxu0 0.0
      %269 = vmatprep.subr.mxu0 0.0
      %270 = vmatpush1.msra.mxu0 0.0
      %271 = vmatprep.subr.mxu0 0.0
      %272 = vmatpush1.msra.mxu0 0.0
      %273 = vmatprep.subr.mxu0 0.0
      %274 = vmatpush1.msra.mxu0 0.0
      %275 = vmatprep.subr.mxu0 0.0
      %276 = vmatpush1.msra.mxu0 0.0
      %277 = vmatprep.subr.mxu0 0.0
      %278 = vmatpush1.msra.mxu0 %v166
      %279 = vmatprep.subr.mxu0 0.0
      %280 = vmatpush1.msra.mxu0 %v165
      %281 = vmatprep.subr.mxu0 0.0
      %282 = vmatpush1.msra.mxu0 %v164
      %283 = vmatprep.subr.mxu0 0.0
      %284 = vmatpush1.msra.mxu0 %v163
      %285 = vmatprep.subr.mxu0 0.0
      %286 = vmatpush2.msra.mxu0 0.0
      %287 = vmatprep.subr.mxu0 0.0
      %288 = vmatpush2.msra.mxu0 0.0
      %289 = vmatprep.subr.mxu0 0.0
      %290 = vmatpush2.msra.mxu0 0.0
      %291 = vmatprep.subr.mxu0 0.0
      %292 = vmatpush2.msra.mxu0 0.0
      %293 = vmatprep.subr.mxu0 0.0
      %294 = vmatpush2.msra.mxu0 0.0
      %295 = vmatprep.subr.mxu0 0.0
      %296 = vmatpush2.msra.mxu0 0.0
      %297 = vmatprep.subr.mxu0 0.0
      %298 = vmatpush2.msra.mxu0 0.0
      %299 = vmatprep.subr.mxu0 0.0
      %300 = vmatpush2.msra.mxu0 0.0
      %301 = vmatprep.subr.mxu0 0.0
      %302 = vmatpush2.msra.mxu0 0.0
      %303 = vmatprep.subr.mxu0 0.0
      %304 = vmatpush2.msra.mxu0 0.0
      %305 = vmatprep.subr.mxu0 0.0
      %306 = vmatpush2.msra.mxu0 0.0
      %307 = vmatprep.subr.mxu0 0.0
      %308 = vmatpush2.msra.mxu0 0.0
      %309 = vmatprep.subr.mxu0 0.0
      %310 = vmatpush2.msra.mxu0 0.0
      %311 = vmatprep.subr.mxu0 0.0
      %312 = vmatpush2.msra.mxu0 0.0
      %313 = vmatprep.subr.mxu0 0.0
      %314 = vmatpush2.msra.mxu0 0.0
      %315 = vmatprep.subr.mxu0 0.0
      %316 = vmatpush2.msra.mxu0 0.0
      %317 = vmatprep.mubr.f32.mxu0 0.0
      %318 = vmatmul.mubr.f32.gmra.mxu0 %v206
      %v319 = vpop.f32.mrf.mxu0
      %v320 = vadd.f32 %v203, %v319
      %v321 = vpop.f32.mrf.mxu0
      %322 = vmatprep.mubr.f32.mxu0 0.0
      %323 = vmatmul.mubr.f32.gmra.mxu0 %v209
      %v324 = vpop.f32.mrf.mxu0
      %v325 = vadd.f32 %v203, %v324
      %v326 = vpop.f32.mrf.mxu0
      %327 = vmatprep.mubr.f32.mxu0 0.0
      %328 = vmatmul.mubr.f32.gmra.mxu0 %v212
      %v329 = vpop.f32.mrf.mxu0
      %v330 = vadd.f32 %v203, %v329
      %v331 = vpop.f32.mrf.mxu0
      %332 = vmatprep.mubr.f32.mxu0 0.0
      %333 = vmatmul.mubr.f32.gmra.mxu0 %v215
      %v334 = vpop.f32.mrf.mxu0
      %v335 = vadd.f32 %v203, %v334
      %v336 = vpop.f32.mrf.mxu0
      %337 = vmatprep.mubr.f32.mxu0 0.0
      %338 = vmatmul.mubr.f32.gmra.mxu0 %v218
      %v339 = vpop.f32.mrf.mxu0
      %v340 = vadd.f32 %v203, %v339
      %v341 = vpop.f32.mrf.mxu0
      %342 = vmatprep.mubr.f32.mxu0 0.0
      %343 = vmatmul.mubr.f32.gmra.mxu0 %v221
      %v344 = vpop.f32.mrf.mxu0
      %v345 = vadd.f32 %v203, %v344
      %v346 = vpop.f32.mrf.mxu0
      %347 = vmatprep.mubr.f32.mxu0 0.0
      %348 = vmatmul.mubr.f32.gmra.mxu0 %v224
      %v349 = vpop.f32.mrf.mxu0
      %v350 = vadd.f32 %v203, %v349
      %v351 = vpop.f32.mrf.mxu0
      %352 = vmatprep.mubr.f32.mxu0 0.0
      %353 = vmatmul.mubr.f32.gmra.mxu0 %v227
      %v354 = vpop.f32.mrf.mxu0
      %v355 = vadd.f32 %v203, %v354
      %v356 = vpop.f32.mrf.mxu0
      %357 = vmatprep.mubr.f32.mxu0 0.0
      %358 = vmatmul.mubr.f32.gmra.mxu0 %v230
      %v359 = vpop.f32.mrf.mxu0
      %v360 = vadd.f32 %v203, %v359
      %v361 = vpop.f32.mrf.mxu0
      %362 = vmatprep.mubr.f32.mxu0 0.0
      %363 = vmatmul.mubr.f32.gmra.mxu0 %v233
      %v364 = vpop.f32.mrf.mxu0
      %v365 = vadd.f32 %v203, %v364
      %v366 = vpop.f32.mrf.mxu0
      %367 = vmatprep.mubr.f32.mxu0 0.0
      %368 = vmatmul.mubr.f32.gmra.mxu0 %v236
      %v369 = vpop.f32.mrf.mxu0
      %v370 = vadd.f32 %v203, %v369
      %v371 = vpop.f32.mrf.mxu0
      %372 = vmatprep.mubr.f32.mxu0 0.0
      %373 = vmatmul.mubr.f32.gmra.mxu0 %v239
      %v374 = vpop.f32.mrf.mxu0
      %v375 = vadd.f32 %v203, %v374
      %v376 = vpop.f32.mrf.mxu0
      %377 = vmatprep.mubr.f32.mxu0 0.0
      %378 = vmatmul.mubr.f32.gmra.mxu0 %v242
      %v379 = vpop.f32.mrf.mxu0
      %v380 = vadd.f32 %v203, %v379
      %v381 = vpop.f32.mrf.mxu0
      %382 = vmatprep.mubr.f32.mxu0 0.0
      %383 = vmatmul.mubr.f32.gmra.mxu0 %v245
      %v384 = vpop.f32.mrf.mxu0
      %v385 = vadd.f32 %v203, %v384
      %v386 = vpop.f32.mrf.mxu0
      %387 = vmatprep.mubr.f32.mxu0 0.0
      %388 = vmatmul.mubr.f32.gmra.mxu0 %v248
      %v389 = vpop.f32.mrf.mxu0
      %v390 = vadd.f32 %v203, %v389
      %v391 = vpop.f32.mrf.mxu0
      %392 = vmatprep.mubr.f32.mxu0 0.0
      %393 = vmatmul.mubr.f32.gmra.mxu0 %v251
      %v394 = vpop.f32.mrf.mxu0
      %v395 = vadd.f32 %v203, %v394
      %v396 = vpop.f32.mrf.mxu0
      %397 = vdwg.mxu0
      %v398 = vmax.f32 %v320, 0.0
      %v399 = vmax.f32 %v325, 0.0
      %v400 = vmax.f32 %v330, 0.0
      %v401 = vmax.f32 %v335, 0.0
      %v402 = vmax.f32 %v340, 0.0
      %v403 = vmax.f32 %v345, 0.0
      %v404 = vmax.f32 %v350, 0.0
      %v405 = vmax.f32 %v355, 0.0
      %v406 = vmax.f32 %v360, 0.0
      %v407 = vmax.f32 %v365, 0.0
      %v408 = vmax.f32 %v370, 0.0
      %v409 = vmax.f32 %v375, 0.0
      %v410 = vmax.f32 %v380, 0.0
      %v411 = vmax.f32 %v385, 0.0
      %v412 = vmax.f32 %v390, 0.0
      %v413 = vmax.f32 %v395, 0.0
      %v414 = vlaneseq
      %v415 = vshrl.u32 %v414, 7
      %v416 = vsub.s32 1, %v415
      %v417 = vrot.slane %v199, %v416
      %418 = vmatprep.subr.mxu0 0.0
      %419 = vmatpush1.msra.mxu0 %v182
      %420 = vmatprep.subr.mxu0 0.0
      %421 = vmatpush1.msra.mxu0 %v181
      %422 = vmatprep.subr.mxu0 0.0
      %423 = vmatpush1.msra.mxu0 %v180
      %424 = vmatprep.subr.mxu0 0.0
      %425 = vmatpush1.msra.mxu0 %v179
      %426 = vmatprep.subr.mxu0 0.0
      %427 = vmatpush1.msra.mxu0 %v178
      %428 = vmatprep.subr.mxu0 0.0
      %429 = vmatpush1.msra.mxu0 %v177
      %430 = vmatprep.subr.mxu0 0.0
      %431 = vmatpush1.msra.mxu0 %v176
      %432 = vmatprep.subr.mxu0 0.0
      %433 = vmatpush1.msra.mxu0 %v175
      %434 = vmatprep.subr.mxu0 0.0
      %435 = vmatpush1.msra.mxu0 %v174
      %436 = vmatprep.subr.mxu0 0.0
      %437 = vmatpush1.msra.mxu0 %v173
      %438 = vmatprep.subr.mxu0 0.0
      %439 = vmatpush1.msra.mxu0 %v172
      %440 = vmatprep.subr.mxu0 0.0
      %441 = vmatpush1.msra.mxu0 %v171
      %442 = vmatprep.subr.mxu0 0.0
      %443 = vmatpush1.msra.mxu0 %v170
      %444 = vmatprep.subr.mxu0 0.0
      %445 = vmatpush1.msra.mxu0 %v169
      %446 = vmatprep.subr.mxu0 0.0
      %447 = vmatpush1.msra.mxu0 %v168
      %448 = vmatprep.subr.mxu0 0.0
      %449 = vmatpush1.msra.mxu0 %v167
      %450 = vmatprep.subr.mxu0 0.0
      %451 = vmatpush2.msra.mxu0 0.0
      %452 = vmatprep.subr.mxu0 0.0
      %453 = vmatpush2.msra.mxu0 0.0
      %454 = vmatprep.subr.mxu0 0.0
      %455 = vmatpush2.msra.mxu0 0.0
      %456 = vmatprep.subr.mxu0 0.0
      %457 = vmatpush2.msra.mxu0 0.0
      %458 = vmatprep.subr.mxu0 0.0
      %459 = vmatpush2.msra.mxu0 0.0
      %460 = vmatprep.subr.mxu0 0.0
      %461 = vmatpush2.msra.mxu0 0.0
      %462 = vmatprep.subr.mxu0 0.0
      %463 = vmatpush2.msra.mxu0 0.0
      %464 = vmatprep.subr.mxu0 0.0
      %465 = vmatpush2.msra.mxu0 0.0
      %466 = vmatprep.subr.mxu0 0.0
      %467 = vmatpush2.msra.mxu0 0.0
      %468 = vmatprep.subr.mxu0 0.0
      %469 = vmatpush2.msra.mxu0 0.0
      %470 = vmatprep.subr.mxu0 0.0
      %471 = vmatpush2.msra.mxu0 0.0
      %472 = vmatprep.subr.mxu0 0.0
      %473 = vmatpush2.msra.mxu0 0.0
      %474 = vmatprep.subr.mxu0 0.0
      %475 = vmatpush2.msra.mxu0 0.0
      %476 = vmatprep.subr.mxu0 0.0
      %477 = vmatpush2.msra.mxu0 0.0
      %478 = vmatprep.subr.mxu0 0.0
      %479 = vmatpush2.msra.mxu0 0.0
      %480 = vmatprep.subr.mxu0 0.0
      %481 = vmatpush2.msra.mxu0 0.0
      %482 = vmatprep.mubr.f32.mxu0 0.0
      %483 = vmatmul.mubr.f32.gmra.mxu0 %v398
      %v484 = vpop.f32.mrf.mxu0
      %v485 = vadd.f32 %v417, %v484
      %v486 = vpop.f32.mrf.mxu0
      %487 = vmatprep.mubr.f32.mxu0 0.0
      %488 = vmatmul.mubr.f32.gmra.mxu0 %v399
      %v489 = vpop.f32.mrf.mxu0
      %v490 = vadd.f32 %v417, %v489
      %v491 = vpop.f32.mrf.mxu0
      %492 = vmatprep.mubr.f32.mxu0 0.0
      %493 = vmatmul.mubr.f32.gmra.mxu0 %v400
      %v494 = vpop.f32.mrf.mxu0
      %v495 = vadd.f32 %v417, %v494
      %v496 = vpop.f32.mrf.mxu0
      %497 = vmatprep.mubr.f32.mxu0 0.0
      %498 = vmatmul.mubr.f32.gmra.mxu0 %v401
      %v499 = vpop.f32.mrf.mxu0
      %v500 = vadd.f32 %v417, %v499
      %v501 = vpop.f32.mrf.mxu0
      %502 = vmatprep.mubr.f32.mxu0 0.0
      %503 = vmatmul.mubr.f32.gmra.mxu0 %v402
      %v504 = vpop.f32.mrf.mxu0
      %v505 = vadd.f32 %v417, %v504
      %v506 = vpop.f32.mrf.mxu0
      %507 = vmatprep.mubr.f32.mxu0 0.0
      %508 = vmatmul.mubr.f32.gmra.mxu0 %v403
      %v509 = vpop.f32.mrf.mxu0
      %v510 = vadd.f32 %v417, %v509
      %v511 = vpop.f32.mrf.mxu0
      %512 = vmatprep.mubr.f32.mxu0 0.0
      %513 = vmatmul.mubr.f32.gmra.mxu0 %v404
      %v514 = vpop.f32.mrf.mxu0
      %v515 = vadd.f32 %v417, %v514
      %v516 = vpop.f32.mrf.mxu0
      %517 = vmatprep.mubr.f32.mxu0 0.0
      %518 = vmatmul.mubr.f32.gmra.mxu0 %v405
      %v519 = vpop.f32.mrf.mxu0
      %v520 = vadd.f32 %v417, %v519
      %v521 = vpop.f32.mrf.mxu0
      %522 = vmatprep.mubr.f32.mxu0 0.0
      %523 = vmatmul.mubr.f32.gmra.mxu0 %v406
      %v524 = vpop.f32.mrf.mxu0
      %v525 = vadd.f32 %v417, %v524
      %v526 = vpop.f32.mrf.mxu0
      %527 = vmatprep.mubr.f32.mxu0 0.0
      %528 = vmatmul.mubr.f32.gmra.mxu0 %v407
      %v529 = vpop.f32.mrf.mxu0
      %v530 = vadd.f32 %v417, %v529
      %v531 = vpop.f32.mrf.mxu0
      %532 = vmatprep.mubr.f32.mxu0 0.0
      %533 = vmatmul.mubr.f32.gmra.mxu0 %v408
      %v534 = vpop.f32.mrf.mxu0
      %v535 = vadd.f32 %v417, %v534
      %v536 = vpop.f32.mrf.mxu0
      %537 = vmatprep.mubr.f32.mxu0 0.0
      %538 = vmatmul.mubr.f32.gmra.mxu0 %v409
      %v539 = vpop.f32.mrf.mxu0
      %v540 = vadd.f32 %v417, %v539
      %v541 = vpop.f32.mrf.mxu0
      %542 = vmatprep.mubr.f32.mxu0 0.0
      %543 = vmatmul.mubr.f32.gmra.mxu0 %v410
      %v544 = vpop.f32.mrf.mxu0
      %v545 = vadd.f32 %v417, %v544
      %v546 = vpop.f32.mrf.mxu0
      %547 = vmatprep.mubr.f32.mxu0 0.0
      %548 = vmatmul.mubr.f32.gmra.mxu0 %v411
      %v549 = vpop.f32.mrf.mxu0
      %v550 = vadd.f32 %v417, %v549
      %v551 = vpop.f32.mrf.mxu0
      %552 = vmatprep.mubr.f32.mxu0 0.0
      %553 = vmatmul.mubr.f32.gmra.mxu0 %v412
      %v554 = vpop.f32.mrf.mxu0
      %v555 = vadd.f32 %v417, %v554
      %v556 = vpop.f32.mrf.mxu0
      %557 = vmatprep.mubr.f32.mxu0 0.0
      %558 = vmatmul.mubr.f32.gmra.mxu0 %v413
      %v559 = vpop.f32.mrf.mxu0
      %v560 = vadd.f32 %v417, %v559
      %v561 = vpop.f32.mrf.mxu0
      %562 = vdwg.mxu0
      %v563 = vmax.f32 %v485, 0.0
      %v564 = vmax.f32 %v490, 0.0
      %v565 = vmax.f32 %v495, 0.0
      %v566 = vmax.f32 %v500, 0.0
      %v567 = vmax.f32 %v505, 0.0
      %v568 = vmax.f32 %v510, 0.0
      %v569 = vmax.f32 %v515, 0.0
      %v570 = vmax.f32 %v520, 0.0
      %v571 = vmax.f32 %v525, 0.0
      %v572 = vmax.f32 %v530, 0.0
      %v573 = vmax.f32 %v535, 0.0
      %v574 = vmax.f32 %v540, 0.0
      %v575 = vmax.f32 %v545, 0.0
      %v576 = vmax.f32 %v550, 0.0
      %v577 = vmax.f32 %v555, 0.0
      %v578 = vmax.f32 %v560, 0.0
      %v579 = vlaneseq
      %v580 = vshrl.u32 %v579, 7
      %v581 = vsub.s32 2, %v580
      %v582 = vrot.slane %v199, %v581
      %583 = vmatprep.subr.mxu0 0.0
      %584 = vmatpush1.msra.mxu0 %v198
      %585 = vmatprep.subr.mxu0 0.0
      %586 = vmatpush1.msra.mxu0 %v197
      %587 = vmatprep.subr.mxu0 0.0
      %588 = vmatpush1.msra.mxu0 %v196
      %589 = vmatprep.subr.mxu0 0.0
      %590 = vmatpush1.msra.mxu0 %v195
      %591 = vmatprep.subr.mxu0 0.0
      %592 = vmatpush1.msra.mxu0 %v194
      %593 = vmatprep.subr.mxu0 0.0
      %594 = vmatpush1.msra.mxu0 %v193
      %595 = vmatprep.subr.mxu0 0.0
      %596 = vmatpush1.msra.mxu0 %v192
      %597 = vmatprep.subr.mxu0 0.0
      %598 = vmatpush1.msra.mxu0 %v191
      %599 = vmatprep.subr.mxu0 0.0
      %600 = vmatpush1.msra.mxu0 %v190
      %601 = vmatprep.subr.mxu0 0.0
      %602 = vmatpush1.msra.mxu0 %v189
      %603 = vmatprep.subr.mxu0 0.0
      %604 = vmatpush1.msra.mxu0 %v188
      %605 = vmatprep.subr.mxu0 0.0
      %606 = vmatpush1.msra.mxu0 %v187
      %607 = vmatprep.subr.mxu0 0.0
      %608 = vmatpush1.msra.mxu0 %v186
      %609 = vmatprep.subr.mxu0 0.0
      %610 = vmatpush1.msra.mxu0 %v185
      %611 = vmatprep.subr.mxu0 0.0
      %612 = vmatpush1.msra.mxu0 %v184
      %613 = vmatprep.subr.mxu0 0.0
      %614 = vmatpush1.msra.mxu0 %v183
      %615 = vmatprep.subr.mxu0 0.0
      %616 = vmatpush2.msra.mxu0 0.0
      %617 = vmatprep.subr.mxu0 0.0
      %618 = vmatpush2.msra.mxu0 0.0
      %619 = vmatprep.subr.mxu0 0.0
      %620 = vmatpush2.msra.mxu0 0.0
      %621 = vmatprep.subr.mxu0 0.0
      %622 = vmatpush2.msra.mxu0 0.0
      %623 = vmatprep.subr.mxu0 0.0
      %624 = vmatpush2.msra.mxu0 0.0
      %625 = vmatprep.subr.mxu0 0.0
      %626 = vmatpush2.msra.mxu0 0.0
      %627 = vmatprep.subr.mxu0 0.0
      %628 = vmatpush2.msra.mxu0 0.0
      %629 = vmatprep.subr.mxu0 0.0
      %630 = vmatpush2.msra.mxu0 0.0
      %631 = vmatprep.subr.mxu0 0.0
      %632 = vmatpush2.msra.mxu0 0.0
      %633 = vmatprep.subr.mxu0 0.0
      %634 = vmatpush2.msra.mxu0 0.0
      %635 = vmatprep.subr.mxu0 0.0
      %636 = vmatpush2.msra.mxu0 0.0
      %637 = vmatprep.subr.mxu0 0.0
      %638 = vmatpush2.msra.mxu0 0.0
      %639 = vmatprep.subr.mxu0 0.0
      %640 = vmatpush2.msra.mxu0 0.0
      %641 = vmatprep.subr.mxu0 0.0
      %642 = vmatpush2.msra.mxu0 0.0
      %643 = vmatprep.subr.mxu0 0.0
      %644 = vmatpush2.msra.mxu0 0.0
      %645 = vmatprep.subr.mxu0 0.0
      %646 = vmatpush2.msra.mxu0 0.0
      %647 = vmatprep.mubr.f32.mxu0 0.0
      %648 = vmatmul.mubr.f32.gmra.mxu0 %v563
      %v649 = vpop.f32.mrf.mxu0
      %v650 = vadd.f32 %v582, %v649
      %v651 = vpop.f32.mrf.mxu0
      %652 = vmatprep.mubr.f32.mxu0 0.0
      %653 = vmatmul.mubr.f32.gmra.mxu0 %v564
      %v654 = vpop.f32.mrf.mxu0
      %v655 = vadd.f32 %v582, %v654
      %v656 = vpop.f32.mrf.mxu0
      %657 = vmatprep.mubr.f32.mxu0 0.0
      %658 = vmatmul.mubr.f32.gmra.mxu0 %v565
      %v659 = vpop.f32.mrf.mxu0
      %v660 = vadd.f32 %v582, %v659
      %v661 = vpop.f32.mrf.mxu0
      %662 = vmatprep.mubr.f32.mxu0 0.0
      %663 = vmatmul.mubr.f32.gmra.mxu0 %v566
      %v664 = vpop.f32.mrf.mxu0
      %v665 = vadd.f32 %v582, %v664
      %v666 = vpop.f32.mrf.mxu0
      %667 = vmatprep.mubr.f32.mxu0 0.0
      %668 = vmatmul.mubr.f32.gmra.mxu0 %v567
      %v669 = vpop.f32.mrf.mxu0
      %v670 = vadd.f32 %v582, %v669
      %v671 = vpop.f32.mrf.mxu0
      %672 = vmatprep.mubr.f32.mxu0 0.0
      %673 = vmatmul.mubr.f32.gmra.mxu0 %v568
      %v674 = vpop.f32.mrf.mxu0
      %v675 = vadd.f32 %v582, %v674
      %v676 = vpop.f32.mrf.mxu0
      %677 = vmatprep.mubr.f32.mxu0 0.0
      %678 = vmatmul.mubr.f32.gmra.mxu0 %v569
      %v679 = vpop.f32.mrf.mxu0
      %v680 = vadd.f32 %v582, %v679
      %v681 = vpop.f32.mrf.mxu0
      %682 = vmatprep.mubr.f32.mxu0 0.0
      %683 = vmatmul.mubr.f32.gmra.mxu0 %v570
      %v684 = vpop.f32.mrf.mxu0
      %v685 = vadd.f32 %v582, %v684
      %v686 = vpop.f32.mrf.mxu0
      %687 = vmatprep.mubr.f32.mxu0 0.0
      %688 = vmatmul.mubr.f32.gmra.mxu0 %v571
      %v689 = vpop.f32.mrf.mxu0
      %v690 = vadd.f32 %v582, %v689
      %v691 = vpop.f32.mrf.mxu0
      %692 = vmatprep.mubr.f32.mxu0 0.0
      %693 = vmatmul.mubr.f32.gmra.mxu0 %v572
      %v694 = vpop.f32.mrf.mxu0
      %v695 = vadd.f32 %v582, %v694
      %v696 = vpop.f32.mrf.mxu0
      %697 = vmatprep.mubr.f32.mxu0 0.0
      %698 = vmatmul.mubr.f32.gmra.mxu0 %v573
      %v699 = vpop.f32.mrf.mxu0
      %v700 = vadd.f32 %v582, %v699
      %v701 = vpop.f32.mrf.mxu0
      %702 = vmatprep.mubr.f32.mxu0 0.0
      %703 = vmatmul.mubr.f32.gmra.mxu0 %v574
      %v704 = vpop.f32.mrf.mxu0
      %v705 = vadd.f32 %v582, %v704
      %v706 = vpop.f32.mrf.mxu0
      %707 = vmatprep.mubr.f32.mxu0 0.0
      %708 = vmatmul.mubr.f32.gmra.mxu0 %v575
      %v709 = vpop.f32.mrf.mxu0
      %v710 = vadd.f32 %v582, %v709
      %v711 = vpop.f32.mrf.mxu0
      %712 = vmatprep.mubr.f32.mxu0 0.0
      %713 = vmatmul.mubr.f32.gmra.mxu0 %v576
      %v714 = vpop.f32.mrf.mxu0
      %v715 = vadd.f32 %v582, %v714
      %v716 = vpop.f32.mrf.mxu0
      %717 = vmatprep.mubr.f32.mxu0 0.0
      %718 = vmatmul.mubr.f32.gmra.mxu0 %v577
      %v719 = vpop.f32.mrf.mxu0
      %v720 = vadd.f32 %v582, %v719
      %v721 = vpop.f32.mrf.mxu0
      %722 = vmatprep.mubr.f32.mxu0 0.0
      %723 = vmatmul.mubr.f32.gmra.mxu0 %v578
      %v724 = vpop.f32.mrf.mxu0
      %v725 = vadd.f32 %v582, %v724
      %v726 = vpop.f32.mrf.mxu0
      %727 = vdwg.mxu0
      %728 = vst [vmem:[%s145] sm:$0xff] %v650
      %729 = vst [vmem:[%s145 + $0x8] sm:$0xff] %v655
      %730 = vst [vmem:[%s145 + $0x10] sm:$0xff] %v660
      %731 = vst [vmem:[%s145 + $0x18] sm:$0xff] %v665
      %732 = vst [vmem:[%s145 + $0x20] sm:$0xff] %v670
      %733 = vst [vmem:[%s145 + $0x28] sm:$0xff] %v675
      %734 = vst [vmem:[%s145 + $0x30] sm:$0xff] %v680
      %735 = vst [vmem:[%s145 + $0x38] sm:$0xff] %v685
      %736 = vst [vmem:[%s145 + $0x40] sm:$0xff] %v690
      %737 = vst [vmem:[%s145 + $0x48] sm:$0xff] %v695
      %738 = vst [vmem:[%s145 + $0x50] sm:$0xff] %v700
      %739 = vst [vmem:[%s145 + $0x58] sm:$0xff] %v705
      %740 = vst [vmem:[%s145 + $0x60] sm:$0xff] %v710
      %741 = vst [vmem:[%s145 + $0x68] sm:$0xff] %v715
      %742 = vst [vmem:[%s145 + $0x70] sm:$0xff] %v720
      %743 = vst [vmem:[%s145 + $0x78] sm:$0xff] %v725
      %s744 = smul.u32 16, %s13
      %p745 = scmp.lt.s32.totalorder %s744, 31
      %s746 = scalar_select %p745, %s744, 31
      %s747 = smul.addr %s746, 8
      %s748 = scalar_lea.vmem %s2, %s747
      // Predicated region
      $region29: #{posvel_kmpnet.1} parent=27 // pred_check
        %p749 = pneg %p78
      $region30: #{posvel_kmpnet.1} parent=27 // pred_check_branch
        %751 = sbr.rel (%p749) target = $region32
      $region31: #{posvel_kmpnet.1} parent=27 // pred_region
        %s752 = smul.u32 16, %s13
      $region32: #{posvel_kmpnet.1} parent=27 // pred_fallthru
        _
    $region28: #{posvel_kmpnet.1} parent=5 // pred_fallthru
      _
    %p753 = scmp.le.s32.totalorder 2, %s8
    // Predicated region
    $region33: #{posvel_kmpnet.1} parent=5 // pred_check
      %p754 = pneg %p753
    $region34: #{posvel_kmpnet.1} parent=5 // pred_check_branch
      %756 = sbr.rel (%p754) target = $region36
    $region35: #{posvel_kmpnet.1} parent=5 // pred_region
      %s757 = ssub.s32 %s8, 2
      // Predicated region
      $region37: #{posvel_kmpnet.1} parent=35 // pred_check
        %p758 = pneg %p84
      $region38: #{posvel_kmpnet.1} parent=35 // pred_check_branch
        %760 = sbr.rel (%p758) target = $region40
      $region39: #{posvel_kmpnet.1} parent=35 // pred_region
        %s761 = smul.u32 16, %s14
        %p762 = scmp.lt.s32.totalorder %s761, 31
        %s763 = scalar_select %p762, %s761, 31
        %s764 = smul.addr %s763, 8
        %s765 = scalar_lea.vmem %s2, %s764
      $region40: #{posvel_kmpnet.1} parent=35 // pred_fallthru
        _
    $region36: #{posvel_kmpnet.1} parent=5 // pred_fallthru
      _
  $region6: #{posvel_kmpnet.1} parent=0 // loop_footer
    %s12 = sadd.s32 1, %s8
  $region7: #{posvel_kmpnet.1} parent=0 // loop_footer_branch
    %7 = sbr.rel target = $region3
  $region8: #{posvel_kmpnet.1} parent=0 // loop_exit
    _

</llo_original>
